<compile_context>
chip_gen: v7x
topology: tpu7x:2x2x1
jax: 0.10.0
libtpu: 0.0.40
codegen_flags: <defaults>
</compile_context>

<pallas_src>
import math

import jax
import jax.numpy as jnp
from jax.experimental import pallas as pl
from jax.experimental.pallas import tpu as pltpu


# --------------------------------------------------------------------------
# Kernel: fused MLP (3x Linear+ReLU, 1x Linear) + row softmax
# --------------------------------------------------------------------------
def _dynamic_weighting_kernel(x_ref, w1_ref, b1_ref, w2_ref, b2_ref,
                              w3_ref, b3_ref, w4_ref, b4_ref, o_ref):
    x = x_ref[...].astype(jnp.float32)

    h = jnp.dot(x, w1_ref[...], preferred_element_type=jnp.float32) + b1_ref[...]
    h = jnp.maximum(h, 0.0)                      # relu(drop1(lin1(x)))

    h = jnp.dot(h, w2_ref[...], preferred_element_type=jnp.float32) + b2_ref[...]
    h = jnp.maximum(h, 0.0)                      # relu(drop2(lin2(x)))

    h = jnp.dot(h, w3_ref[...], preferred_element_type=jnp.float32) + b3_ref[...]
    h = jnp.maximum(h, 0.0)                      # relu(drop3(lin3(x)))

    logits = jnp.dot(h, w4_ref[...], preferred_element_type=jnp.float32) + b4_ref[...]

    # Numerically stable softmax over the last dim; reciprocal+mul, not divide.
    m = jnp.max(logits, axis=-1, keepdims=True)
    e = jnp.exp(logits - m)
    inv = pl.reciprocal(jnp.sum(e, axis=-1, keepdims=True), approx=False)
    o_ref[...] = (e * inv).astype(o_ref.dtype)


# --------------------------------------------------------------------------
# Wrapper
# --------------------------------------------------------------------------
def dynamic_weighting_forward(x, params, *, max_tile_m=512):
    """x: (..., embed_dim). Returns softmax(lin4(mlp(x)), -1).squeeze(0)."""
    w1, b1, w2, b2, w3, b3, w4, b4 = params
    d_in = w1.shape[0]
    out_dim = w4.shape[1]
    assert x.shape[-1] == d_in, f"expected last dim {d_in}, got {x.shape}"

    lead = x.shape[:-1]
    M = int(math.prod(lead)) if lead else 1
    x2 = x.reshape(M, d_in)

    # Row tile: as large as possible (amortize per-step overhead), multiple of 8
    # when M >= 8, otherwise a full-extent block.
    if M >= 8:
        tm = min(max_tile_m, ((M + 7) // 8) * 8)
    else:
        tm = M
    grid = (pl.cdiv(M, tm),)

    # Biases as (1, H) rows so they broadcast against (tm, H) tiles.
    b1r = b1.reshape(1, -1)
    b2r = b2.reshape(1, -1)
    b3r = b3.reshape(1, -1)
    b4r = b4.reshape(1, -1)

    row_map = lambda i: (i, 0)     # tiled over rows
    const_map = lambda i: (0, 0)   # same block every step -> stays VMEM-resident

    out2 = pl.pallas_call(
        _dynamic_weighting_kernel,
        out_shape=jax.ShapeDtypeStruct((M, out_dim), x.dtype),
        grid=grid,
        in_specs=[
            pl.BlockSpec((tm, d_in), row_map),
            pl.BlockSpec(w1.shape, const_map),
            pl.BlockSpec(b1r.shape, const_map),
            pl.BlockSpec(w2.shape, const_map),
            pl.BlockSpec(b2r.shape, const_map),
            pl.BlockSpec(w3.shape, const_map),
            pl.BlockSpec(b3r.shape, const_map),
            pl.BlockSpec(w4.shape, const_map),
            pl.BlockSpec(b4r.shape, const_map),
        ],
        out_specs=pl.BlockSpec((tm, out_dim), row_map),
        compiler_params=pltpu.CompilerParams(
            dimension_semantics=("parallel",)),
    )(x2, w1, b1r, w2, b2r, w3, b3r, w4, b4r)

    out = out2.reshape(lead + (out_dim,))
    # torch .squeeze(0): drop leading dim only if it has size 1.
    if out.ndim > 0 and out.shape[0] == 1:
        out = out[0]
    return out


class DynamicWeighting:
    """JAX/Pallas port of the PyTorch DynamicWeighting module (inference)."""

    def __init__(self, embed_dim=20, mlp_ratio=2, mlp_drop=0.1, output_dim=2, *, key):
        hidden = embed_dim * mlp_ratio
        ks = jax.random.split(key, 8)

        def init_linear(kw, kb, fan_in, fan_out):
            # Match nn.Linear default init: U(-1/sqrt(fan_in), 1/sqrt(fan_in)).
            bound = 1.0 / math.sqrt(fan_in)
            w = jax.random.uniform(kw, (fan_in, fan_out), jnp.float32, -bound, bound)
            b = jax.random.uniform(kb, (fan_out,), jnp.float32, -bound, bound)
            return w, b

        self.w1, self.b1 = init_linear(ks[0], ks[1], embed_dim, hidden)
        self.w2, self.b2 = init_linear(ks[2], ks[3], hidden, hidden)
        self.w3, self.b3 = init_linear(ks[4], ks[5], hidden, embed_dim)
        self.w4, self.b4 = init_linear(ks[6], ks[7], embed_dim, output_dim)
        self.mlp_drop = mlp_drop  # identity in this forward (see TODO above)

    @property
    def params(self):
        return (self.w1, self.b1, self.w2, self.b2,
                self.w3, self.b3, self.w4, self.b4)

    def __call__(self, x):
        return dynamic_weighting_forward(x, self.params)


# --------------------------------------------------------------------------
# Pure-JAX reference for verification
# --------------------------------------------------------------------------
def _dynamic_weighting_ref(x, params):
    w1, b1, w2, b2, w3, b3, w4, b4 = params
    h = jax.nn.relu(x @ w1 + b1)
    h = jax.nn.relu(h @ w2 + b2)
    h = jax.nn.relu(h @ w3 + b3)
    out = jax.nn.softmax(h @ w4 + b4, axis=-1)
    if out.ndim > 0 and out.shape[0] == 1:
        out = out[0]
    return out


if __name__ == "__main__":
    key = jax.random.PRNGKey(0)
    k_param, k_x = jax.random.split(key)

    # batch=1 (exercises squeeze(0)), seq=8, embed_dim=20 -> output (8, 2)
    mod = DynamicWeighting(embed_dim=20, mlp_ratio=2, mlp_drop=0.1,
                           output_dim=2, key=k_param)
    x = jax.random.normal(k_x, (1, 8, 20), dtype=jnp.float32)

    out = jax.block_until_ready(mod(x))
    ref = _dynamic_weighting_ref(x, mod.params)

    assert out.shape == (8, 2), out.shape
    assert out.dtype == x.dtype
    assert jnp.max(jnp.abs(out - ref)) < 1e-5
    # softmax rows must sum to 1
    assert jnp.max(jnp.abs(jnp.sum(out, axis=-1) - 1.0)) < 1e-5

    print("KERNEL_OK")
</pallas_src>

<mosaic_0001>
module attributes {stable_mosaic.version = 11 : i64} {
  func.func @_dynamic_weighting_kernel(%arg0: i32, %arg1: memref<8x20xf32, #tpu.memory_space<vmem>>, %arg2: memref<20x40xf32, #tpu.memory_space<vmem>>, %arg3: memref<1x40xf32, #tpu.memory_space<vmem>>, %arg4: memref<40x40xf32, #tpu.memory_space<vmem>>, %arg5: memref<1x40xf32, #tpu.memory_space<vmem>>, %arg6: memref<40x20xf32, #tpu.memory_space<vmem>>, %arg7: memref<1x20xf32, #tpu.memory_space<vmem>>, %arg8: memref<20x2xf32, #tpu.memory_space<vmem>>, %arg9: memref<1x2xf32, #tpu.memory_space<vmem>>, %arg10: memref<8x2xf32, #tpu.memory_space<vmem>>) attributes {dimension_semantics = [#tpu.dimension_semantics<parallel>], iteration_bounds = array<i64: 1>, scalar_prefetch = 0 : i64, scratch_operands = 0 : i64, tpu.core_type = #tpu.core_type<tc>, window_params = [{transform_indices = @transform_0, window_bounds = array<i64: 8, 20>}, {pipeline_mode = #tpu.pipeline_mode<synchronous>, transform_indices = @transform_1, window_bounds = array<i64: 20, 40>}, {pipeline_mode = #tpu.pipeline_mode<synchronous>, transform_indices = @transform_2, window_bounds = array<i64: 1, 40>}, {pipeline_mode = #tpu.pipeline_mode<synchronous>, transform_indices = @transform_3, window_bounds = array<i64: 40, 40>}, {pipeline_mode = #tpu.pipeline_mode<synchronous>, transform_indices = @transform_4, window_bounds = array<i64: 1, 40>}, {pipeline_mode = #tpu.pipeline_mode<synchronous>, transform_indices = @transform_5, window_bounds = array<i64: 40, 20>}, {pipeline_mode = #tpu.pipeline_mode<synchronous>, transform_indices = @transform_6, window_bounds = array<i64: 1, 20>}, {pipeline_mode = #tpu.pipeline_mode<synchronous>, transform_indices = @transform_7, window_bounds = array<i64: 20, 2>}, {pipeline_mode = #tpu.pipeline_mode<synchronous>, transform_indices = @transform_8, window_bounds = array<i64: 1, 2>}, {transform_indices = @transform_9, window_bounds = array<i64: 8, 2>}]} {
    %c0 = arith.constant 0 : index
    %c0_0 = arith.constant 0 : index
    %0 = vector.load %arg1[%c0, %c0_0] : memref<8x20xf32, #tpu.memory_space<vmem>>, vector<8x20xf32>
    %c0_1 = arith.constant 0 : index
    %c0_2 = arith.constant 0 : index
    %1 = vector.load %arg2[%c0_1, %c0_2] : memref<20x40xf32, #tpu.memory_space<vmem>>, vector<20x40xf32>
    %cst = arith.constant dense<0.000000e+00> : vector<8x40xf32>
    %2 = tpu.matmul %0, %1, %cst {dimension_numbers = #tpu.dot_dimension_numbers<[1], [0], [0], [1], [0, 0, 1, 1], [], []>} : vector<8x20xf32>, vector<20x40xf32>, vector<8x40xf32> -> vector<8x40xf32>
    %c0_3 = arith.constant 0 : index
    %c0_4 = arith.constant 0 : index
    %3 = vector.load %arg3[%c0_3, %c0_4] : memref<1x40xf32, #tpu.memory_space<vmem>>, vector<1x40xf32>
    %4 = vector.broadcast %3 : vector<1x40xf32> to vector<8x40xf32>
    %5 = arith.addf %2, %4 : vector<8x40xf32>
    %cst_5 = arith.constant 0.000000e+00 : f32
    %6 = vector.broadcast %cst_5 : f32 to vector<8x40xf32>
    %7 = arith.maximumf %5, %6 : vector<8x40xf32>
    %c0_6 = arith.constant 0 : index
    %c0_7 = arith.constant 0 : index
    %8 = vector.load %arg4[%c0_6, %c0_7] : memref<40x40xf32, #tpu.memory_space<vmem>>, vector<40x40xf32>
    %cst_8 = arith.constant dense<0.000000e+00> : vector<8x40xf32>
    %9 = tpu.matmul %7, %8, %cst_8 {dimension_numbers = #tpu.dot_dimension_numbers<[1], [0], [0], [1], [0, 0, 1, 1], [], []>} : vector<8x40xf32>, vector<40x40xf32>, vector<8x40xf32> -> vector<8x40xf32>
    %c0_9 = arith.constant 0 : index
    %c0_10 = arith.constant 0 : index
    %10 = vector.load %arg5[%c0_9, %c0_10] : memref<1x40xf32, #tpu.memory_space<vmem>>, vector<1x40xf32>
    %11 = vector.broadcast %10 : vector<1x40xf32> to vector<8x40xf32>
    %12 = arith.addf %9, %11 : vector<8x40xf32>
    %cst_11 = arith.constant 0.000000e+00 : f32
    %13 = vector.broadcast %cst_11 : f32 to vector<8x40xf32>
    %14 = arith.maximumf %12, %13 : vector<8x40xf32>
    %c0_12 = arith.constant 0 : index
    %c0_13 = arith.constant 0 : index
    %15 = vector.load %arg6[%c0_12, %c0_13] : memref<40x20xf32, #tpu.memory_space<vmem>>, vector<40x20xf32>
    %cst_14 = arith.constant dense<0.000000e+00> : vector<8x20xf32>
    %16 = tpu.matmul %14, %15, %cst_14 {dimension_numbers = #tpu.dot_dimension_numbers<[1], [0], [0], [1], [0, 0, 1, 1], [], []>} : vector<8x40xf32>, vector<40x20xf32>, vector<8x20xf32> -> vector<8x20xf32>
    %c0_15 = arith.constant 0 : index
    %c0_16 = arith.constant 0 : index
    %17 = vector.load %arg7[%c0_15, %c0_16] : memref<1x20xf32, #tpu.memory_space<vmem>>, vector<1x20xf32>
    %18 = vector.broadcast %17 : vector<1x20xf32> to vector<8x20xf32>
    %19 = arith.addf %16, %18 : vector<8x20xf32>
    %cst_17 = arith.constant 0.000000e+00 : f32
    %20 = vector.broadcast %cst_17 : f32 to vector<8x20xf32>
    %21 = arith.maximumf %19, %20 : vector<8x20xf32>
    %c0_18 = arith.constant 0 : index
    %c0_19 = arith.constant 0 : index
    %22 = vector.load %arg8[%c0_18, %c0_19] : memref<20x2xf32, #tpu.memory_space<vmem>>, vector<20x2xf32>
    %cst_20 = arith.constant dense<0.000000e+00> : vector<8x2xf32>
    %23 = tpu.matmul %21, %22, %cst_20 {dimension_numbers = #tpu.dot_dimension_numbers<[1], [0], [0], [1], [0, 0, 1, 1], [], []>} : vector<8x20xf32>, vector<20x2xf32>, vector<8x2xf32> -> vector<8x2xf32>
    %c0_21 = arith.constant 0 : index
    %c0_22 = arith.constant 0 : index
    %24 = vector.load %arg9[%c0_21, %c0_22] : memref<1x2xf32, #tpu.memory_space<vmem>>, vector<1x2xf32>
    %25 = vector.broadcast %24 : vector<1x2xf32> to vector<8x2xf32>
    %26 = arith.addf %23, %25 : vector<8x2xf32>
    %cst_23 = arith.constant dense<0xFF800000> : vector<8xf32>
    %27 = vector.multi_reduction <maximumf>, %26, %cst_23 [1] : vector<8x2xf32> to vector<8xf32>
    %28 = vector.shape_cast %27 : vector<8xf32> to vector<8x1xf32>
    %29 = vector.broadcast %28 : vector<8x1xf32> to vector<8x2xf32>
    %30 = arith.subf %26, %29 : vector<8x2xf32>
    %31 = math.exp %30 : vector<8x2xf32>
    %cst_24 = arith.constant dense<0.000000e+00> : vector<8xf32>
    %32 = vector.multi_reduction <add>, %31, %cst_24 [1] : vector<8x2xf32> to vector<8xf32>
    %33 = vector.shape_cast %32 : vector<8xf32> to vector<8x1xf32>
    %34 = tpu.reciprocal %33 : vector<8x1xf32> -> vector<8x1xf32>
    %35 = vector.broadcast %34 : vector<8x1xf32> to vector<8x2xf32>
    %36 = arith.mulf %31, %35 : vector<8x2xf32>
    %c0_25 = arith.constant 0 : index
    %c0_26 = arith.constant 0 : index
    %37 = vector.load %arg10[%c0_25, %c0_26] : memref<8x2xf32, #tpu.memory_space<vmem>>, vector<8x2xf32>
    tpu.vector_store %arg10[%c0_25, %c0_26], %36 {strides = array<i32>} : memref<8x2xf32, #tpu.memory_space<vmem>>, vector<8x2xf32>,
    return
  }
  func.func @transform_0(%arg0: i32) -> (i32, i32) {
    %c0_i32 = arith.constant 0 : i32
    %c0_i32_0 = arith.constant 0 : i32
    return %arg0, %c0_i32 : i32, i32
  }
  func.func @transform_1(%arg0: i32) -> (i32, i32) {
    %c0_i32 = arith.constant 0 : i32
    %c0_i32_0 = arith.constant 0 : i32
    %c0_i32_1 = arith.constant 0 : i32
    return %c0_i32, %c0_i32_0 : i32, i32
  }
  func.func @transform_2(%arg0: i32) -> (i32, i32) {
    %c0_i32 = arith.constant 0 : i32
    %c0_i32_0 = arith.constant 0 : i32
    %c0_i32_1 = arith.constant 0 : i32
    return %c0_i32, %c0_i32_0 : i32, i32
  }
  func.func @transform_3(%arg0: i32) -> (i32, i32) {
    %c0_i32 = arith.constant 0 : i32
    %c0_i32_0 = arith.constant 0 : i32
    %c0_i32_1 = arith.constant 0 : i32
    return %c0_i32, %c0_i32_0 : i32, i32
  }
  func.func @transform_4(%arg0: i32) -> (i32, i32) {
    %c0_i32 = arith.constant 0 : i32
    %c0_i32_0 = arith.constant 0 : i32
    %c0_i32_1 = arith.constant 0 : i32
    return %c0_i32, %c0_i32_0 : i32, i32
  }
  func.func @transform_5(%arg0: i32) -> (i32, i32) {
    %c0_i32 = arith.constant 0 : i32
    %c0_i32_0 = arith.constant 0 : i32
    %c0_i32_1 = arith.constant 0 : i32
    return %c0_i32, %c0_i32_0 : i32, i32
  }
  func.func @transform_6(%arg0: i32) -> (i32, i32) {
    %c0_i32 = arith.constant 0 : i32
    %c0_i32_0 = arith.constant 0 : i32
    %c0_i32_1 = arith.constant 0 : i32
    return %c0_i32, %c0_i32_0 : i32, i32
  }
  func.func @transform_7(%arg0: i32) -> (i32, i32) {
    %c0_i32 = arith.constant 0 : i32
    %c0_i32_0 = arith.constant 0 : i32
    %c0_i32_1 = arith.constant 0 : i32
    return %c0_i32, %c0_i32_0 : i32, i32
  }
  func.func @transform_8(%arg0: i32) -> (i32, i32) {
    %c0_i32 = arith.constant 0 : i32
    %c0_i32_0 = arith.constant 0 : i32
    %c0_i32_1 = arith.constant 0 : i32
    return %c0_i32, %c0_i32_0 : i32, i32
  }
  func.func @transform_9(%arg0: i32) -> (i32, i32) {
    %c0_i32 = arith.constant 0 : i32
    %c0_i32_0 = arith.constant 0 : i32
    return %arg0, %c0_i32 : i32, i32
  }
}

</mosaic_0001>

<llo_original>
// kernel: tpu_custom_call.1
$region0: #{tpu_custom_call.1}
  #allocation0 [shape = 'u32[]', space=smem, size = 0x4, offset = 0x4, fixed_abs, tag = 'smem constant byte address 0x4 - core index']
  #allocation1 [shape = 'u32[144,128]{1,0:T(1,128)}', space=vmem, size = 0x12000, scoped, tag = 'internal scratch']
  %s0 = inlined_call_operand.vmem [shape: f32[8,20], index: 0, kind: input, shape index: {}]
  %s1 = inlined_call_operand.vmem [shape: f32[20,40], index: 1, kind: input, shape index: {}]
  %s2 = inlined_call_operand.vmem [shape: f32[1,40], index: 2, kind: input, shape index: {}]
  %s3 = inlined_call_operand.vmem [shape: f32[40,40], index: 3, kind: input, shape index: {}]
  %s4 = inlined_call_operand.vmem [shape: f32[1,40], index: 4, kind: input, shape index: {}]
  %s5 = inlined_call_operand.vmem [shape: f32[40,20], index: 5, kind: input, shape index: {}]
  %s6 = inlined_call_operand.vmem [shape: f32[1,20], index: 6, kind: input, shape index: {}]
  %s7 = inlined_call_operand.vmem [shape: f32[20,2], index: 7, kind: input, shape index: {}]
  %s8 = inlined_call_operand.vmem [shape: f32[1,2], index: 8, kind: input, shape index: {}]
  %s9 = inlined_call_operand.vmem [shape: f32[8,2], index: 9, kind: output, shape index: {}]
  %s10 = sld [smem:[#allocation0]]
  $region46: #{tpu_custom_call.1} parent=0
    _
  %s12 = ssub.s32 1, %s10
  %s13 = scalar_select 0, %s12, %s10
  // Predicated region
  $region2: #{tpu_custom_call.1} parent=0 // pred_check
    _
  $region3: #{tpu_custom_call.1} parent=0 // pred_check_branch
    %15 = sbr.rel (0) target = $region5
  $region4: #{tpu_custom_call.1} parent=0 // pred_region
    _
  $region5: #{tpu_custom_call.1} parent=0 // pred_fallthru
    _
  // Predicated region
  $region6: #{tpu_custom_call.1} parent=0 // pred_check
    _
  $region7: #{tpu_custom_call.1} parent=0 // pred_check_branch
    %17 = sbr.rel (0) target = $region9
  $region8: #{tpu_custom_call.1} parent=0 // pred_region
    _
  $region9: #{tpu_custom_call.1} parent=0 // pred_fallthru
    _
  // Predicated region
  $region10: #{tpu_custom_call.1} parent=0 // pred_check
    _
  $region11: #{tpu_custom_call.1} parent=0 // pred_check_branch
    %19 = sbr.rel (0) target = $region13
  $region12: #{tpu_custom_call.1} parent=0 // pred_region
    _
  $region13: #{tpu_custom_call.1} parent=0 // pred_fallthru
    _
  // Predicated region
  $region14: #{tpu_custom_call.1} parent=0 // pred_check
    _
  $region15: #{tpu_custom_call.1} parent=0 // pred_check_branch
    %21 = sbr.rel (0) target = $region17
  $region16: #{tpu_custom_call.1} parent=0 // pred_region
    _
  $region17: #{tpu_custom_call.1} parent=0 // pred_fallthru
    _
  // Predicated region
  $region18: #{tpu_custom_call.1} parent=0 // pred_check
    _
  $region19: #{tpu_custom_call.1} parent=0 // pred_check_branch
    %23 = sbr.rel (0) target = $region21
  $region20: #{tpu_custom_call.1} parent=0 // pred_region
    _
  $region21: #{tpu_custom_call.1} parent=0 // pred_fallthru
    _
  // Predicated region
  $region22: #{tpu_custom_call.1} parent=0 // pred_check
    _
  $region23: #{tpu_custom_call.1} parent=0 // pred_check_branch
    %25 = sbr.rel (0) target = $region25
  $region24: #{tpu_custom_call.1} parent=0 // pred_region
    _
  $region25: #{tpu_custom_call.1} parent=0 // pred_fallthru
    _
  // Predicated region
  $region26: #{tpu_custom_call.1} parent=0 // pred_check
    _
  $region27: #{tpu_custom_call.1} parent=0 // pred_check_branch
    %27 = sbr.rel (0) target = $region29
  $region28: #{tpu_custom_call.1} parent=0 // pred_region
    _
  $region29: #{tpu_custom_call.1} parent=0 // pred_fallthru
    _
  // Predicated region
  $region30: #{tpu_custom_call.1} parent=0 // pred_check
    _
  $region31: #{tpu_custom_call.1} parent=0 // pred_check_branch
    %29 = sbr.rel (0) target = $region33
  $region32: #{tpu_custom_call.1} parent=0 // pred_region
    _
  $region33: #{tpu_custom_call.1} parent=0 // pred_fallthru
    _
  // Predicated region
  $region34: #{tpu_custom_call.1} parent=0 // pred_check
    _
  $region35: #{tpu_custom_call.1} parent=0 // pred_check_branch
    %31 = sbr.rel (0) target = $region37
  $region36: #{tpu_custom_call.1} parent=0 // pred_region
    _
  $region37: #{tpu_custom_call.1} parent=0 // pred_fallthru
    _
  %v32 = vld [vmem:[%s0] sm:$0xff]
  %v33 = vld [vmem:[%s1] sm:$0xff]
  %v34 = vld [vmem:[%s1 + $0x8] sm:$0xff]
  %v35 = vld [vmem:[%s1 + $0x10] sm:$0xf]
  %v36 = vld [vmem:[%s2] sm:$0x1]
  %v38 = vlaneseq
  %v39 = vshrl.u32 %v38, 7
  %v40 = vsub.s32 0, %v39
  %v41 = vrot.slane %v36, %v40
  %vm43 = vcmask 162816
  %v45 = vsel %vm43, %v32, 0
  %vm47 = vcmask 1043456
  %v49 = vsel %vm47, %v35, 0
  %51 = vmatprep.subr.mxu0 0.0
  %52 = vmatpush1.msra.mxu0 %v33
  %53 = vmatprep.subr.mxu0 0.0
  %54 = vmatpush1.msra.mxu0 %v34
  %55 = vmatprep.subr.mxu0 0.0
  %56 = vmatpush1.msra.mxu0 %v49
  %57 = vmatprep.subr.mxu0 0.0
  %58 = vmatpush1.msra.mxu0 0.0
  %59 = vmatprep.subr.mxu0 0.0
  %60 = vmatpush1.msra.mxu0 0.0
  %61 = vmatprep.subr.mxu0 0.0
  %62 = vmatpush1.msra.mxu0 0.0
  %63 = vmatprep.subr.mxu0 0.0
  %64 = vmatpush1.msra.mxu0 0.0
  %65 = vmatprep.subr.mxu0 0.0
  %66 = vmatpush1.msra.mxu0 0.0
  %67 = vmatprep.subr.mxu0 0.0
  %68 = vmatpush1.msra.mxu0 0.0
  %69 = vmatprep.subr.mxu0 0.0
  %70 = vmatpush1.msra.mxu0 0.0
  %71 = vmatprep.subr.mxu0 0.0
  %72 = vmatpush1.msra.mxu0 0.0
  %73 = vmatprep.subr.mxu0 0.0
  %74 = vmatpush1.msra.mxu0 0.0
  %75 = vmatprep.subr.mxu0 0.0
  %76 = vmatpush1.msra.mxu0 0.0
  %77 = vmatprep.subr.mxu0 0.0
  %78 = vmatpush1.msra.mxu0 0.0
  %79 = vmatprep.subr.mxu0 0.0
  %80 = vmatpush1.msra.mxu0 0.0
  %81 = vmatprep.subr.mxu0 0.0
  %82 = vmatpush1.msra.mxu0 0.0
  %83 = vmatprep.subr.mxu0 0.0
  %84 = vmatpush1.msra.mxu0 0.0
  %85 = vmatprep.subr.mxu0 0.0
  %86 = vmatpush1.msra.mxu0 0.0
  %87 = vmatprep.subr.mxu0 0.0
  %88 = vmatpush1.msra.mxu0 0.0
  %89 = vmatprep.subr.mxu0 0.0
  %90 = vmatpush1.msra.mxu0 0.0
  %91 = vmatprep.subr.mxu0 0.0
  %92 = vmatpush1.msra.mxu0 0.0
  %93 = vmatprep.subr.mxu0 0.0
  %94 = vmatpush1.msra.mxu0 0.0
  %95 = vmatprep.subr.mxu0 0.0
  %96 = vmatpush1.msra.mxu0 0.0
  %97 = vmatprep.subr.mxu0 0.0
  %98 = vmatpush1.msra.mxu0 0.0
  %99 = vmatprep.subr.mxu0 0.0
  %100 = vmatpush1.msra.mxu0 0.0
  %101 = vmatprep.subr.mxu0 0.0
  %102 = vmatpush1.msra.mxu0 0.0
  %103 = vmatprep.subr.mxu0 0.0
  %104 = vmatpush1.msra.mxu0 0.0
  %105 = vmatprep.subr.mxu0 0.0
  %106 = vmatpush1.msra.mxu0 0.0
  %107 = vmatprep.subr.mxu0 0.0
  %108 = vmatpush1.msra.mxu0 0.0
  %109 = vmatprep.subr.mxu0 0.0
  %110 = vmatpush1.msra.mxu0 0.0
  %111 = vmatprep.subr.mxu0 0.0
  %112 = vmatpush1.msra.mxu0 0.0
  %113 = vmatprep.subr.mxu0 0.0
  %114 = vmatpush1.msra.mxu0 0.0
  %115 = vmatprep.mubr.f32.mxu0 0.0
  %116 = vmatmul.mubr.f32.gmra.mrb[0].mxu0 %v45
  %v117 = vpop.f32.mrb[0].mxu0
  %v118 = vadd.f32 %v41, %v117
  %v119 = vpop.f32.mrb[0].mxu0
  %120 = vdwg.mxu0
  %v121 = vmax.f32 %v118, 0.0
  %v122 = vld [vmem:[%s3] sm:$0xff]
  %v123 = vld [vmem:[%s3 + $0x8] sm:$0xff]
  %v124 = vld [vmem:[%s3 + $0x10] sm:$0xff]
  %v125 = vld [vmem:[%s3 + $0x18] sm:$0xff]
  %v126 = vld [vmem:[%s3 + $0x20] sm:$0xff]
  %v127 = vld [vmem:[%s4] sm:$0x1]
  %v129 = vlaneseq
  %v130 = vshrl.u32 %v129, 7
  %v131 = vsub.s32 0, %v130
  %v132 = vrot.slane %v127, %v131
  %vm134 = vcmask 326656
  %v136 = vsel %vm134, %v121, 0
  %138 = vmatprep.subr.mxu0 0.0
  %139 = vmatpush1.msra.mxu0 %v122
  %140 = vmatprep.subr.mxu0 0.0
  %141 = vmatpush1.msra.mxu0 %v123
  %142 = vmatprep.subr.mxu0 0.0
  %143 = vmatpush1.msra.mxu0 %v124
  %144 = vmatprep.subr.mxu0 0.0
  %145 = vmatpush1.msra.mxu0 %v125
  %146 = vmatprep.subr.mxu0 0.0
  %147 = vmatpush1.msra.mxu0 %v126
  %148 = vmatprep.subr.mxu0 0.0
  %149 = vmatpush1.msra.mxu0 0.0
  %150 = vmatprep.subr.mxu0 0.0
  %151 = vmatpush1.msra.mxu0 0.0
  %152 = vmatprep.subr.mxu0 0.0
  %153 = vmatpush1.msra.mxu0 0.0
  %154 = vmatprep.subr.mxu0 0.0
  %155 = vmatpush1.msra.mxu0 0.0
  %156 = vmatprep.subr.mxu0 0.0
  %157 = vmatpush1.msra.mxu0 0.0
  %158 = vmatprep.subr.mxu0 0.0
  %159 = vmatpush1.msra.mxu0 0.0
  %160 = vmatprep.subr.mxu0 0.0
  %161 = vmatpush1.msra.mxu0 0.0
  %162 = vmatprep.subr.mxu0 0.0
  %163 = vmatpush1.msra.mxu0 0.0
  %164 = vmatprep.subr.mxu0 0.0
  %165 = vmatpush1.msra.mxu0 0.0
  %166 = vmatprep.subr.mxu0 0.0
  %167 = vmatpush1.msra.mxu0 0.0
  %168 = vmatprep.subr.mxu0 0.0
  %169 = vmatpush1.msra.mxu0 0.0
  %170 = vmatprep.subr.mxu0 0.0
  %171 = vmatpush1.msra.mxu0 0.0
  %172 = vmatprep.subr.mxu0 0.0
  %173 = vmatpush1.msra.mxu0 0.0
  %174 = vmatprep.subr.mxu0 0.0
  %175 = vmatpush1.msra.mxu0 0.0
  %176 = vmatprep.subr.mxu0 0.0
  %177 = vmatpush1.msra.mxu0 0.0
  %178 = vmatprep.subr.mxu0 0.0
  %179 = vmatpush1.msra.mxu0 0.0
  %180 = vmatprep.subr.mxu0 0.0
  %181 = vmatpush1.msra.mxu0 0.0
  %182 = vmatprep.subr.mxu0 0.0
  %183 = vmatpush1.msra.mxu0 0.0
  %184 = vmatprep.subr.mxu0 0.0
  %185 = vmatpush1.msra.mxu0 0.0
  %186 = vmatprep.subr.mxu0 0.0
  %187 = vmatpush1.msra.mxu0 0.0
  %188 = vmatprep.subr.mxu0 0.0
  %189 = vmatpush1.msra.mxu0 0.0
  %190 = vmatprep.subr.mxu0 0.0
  %191 = vmatpush1.msra.mxu0 0.0
  %192 = vmatprep.subr.mxu0 0.0
  %193 = vmatpush1.msra.mxu0 0.0
  %194 = vmatprep.subr.mxu0 0.0
  %195 = vmatpush1.msra.mxu0 0.0
  %196 = vmatprep.subr.mxu0 0.0
  %197 = vmatpush1.msra.mxu0 0.0
  %198 = vmatprep.subr.mxu0 0.0
  %199 = vmatpush1.msra.mxu0 0.0
  %200 = vmatprep.subr.mxu0 0.0
  %201 = vmatpush1.msra.mxu0 0.0
  %202 = vmatprep.mubr.f32.mxu0 0.0
  %203 = vmatmul.mubr.f32.gmra.mrb[0].mxu0 %v136
  %v204 = vpop.f32.mrb[0].mxu0
  %v205 = vadd.f32 %v132, %v204
  %v206 = vpop.f32.mrb[0].mxu0
  %207 = vdwg.mxu0
  %v208 = vmax.f32 %v205, 0.0
  %v209 = vld [vmem:[%s5] sm:$0xff]
  %v210 = vld [vmem:[%s5 + $0x8] sm:$0xff]
  %v211 = vld [vmem:[%s5 + $0x10] sm:$0xff]
  %v212 = vld [vmem:[%s5 + $0x18] sm:$0xff]
  %v213 = vld [vmem:[%s5 + $0x20] sm:$0xff]
  %v214 = vld [vmem:[%s6] sm:$0x1]
  %v216 = vlaneseq
  %v217 = vshrl.u32 %v216, 7
  %v218 = vsub.s32 0, %v217
  %v219 = vrot.slane %v214, %v218
  %v222 = vsel %vm134, %v208, 0
  %224 = vmatprep.subr.mxu0 0.0
  %225 = vmatpush1.msra.mxu0 %v209
  %226 = vmatprep.subr.mxu0 0.0
  %227 = vmatpush1.msra.mxu0 %v210
  %228 = vmatprep.subr.mxu0 0.0
  %229 = vmatpush1.msra.mxu0 %v211
  %230 = vmatprep.subr.mxu0 0.0
  %231 = vmatpush1.msra.mxu0 %v212
  %232 = vmatprep.subr.mxu0 0.0
  %233 = vmatpush1.msra.mxu0 %v213
  %234 = vmatprep.subr.mxu0 0.0
  %235 = vmatpush1.msra.mxu0 0.0
  %236 = vmatprep.subr.mxu0 0.0
  %237 = vmatpush1.msra.mxu0 0.0
  %238 = vmatprep.subr.mxu0 0.0
  %239 = vmatpush1.msra.mxu0 0.0
  %240 = vmatprep.subr.mxu0 0.0
  %241 = vmatpush1.msra.mxu0 0.0
  %242 = vmatprep.subr.mxu0 0.0
  %243 = vmatpush1.msra.mxu0 0.0
  %244 = vmatprep.subr.mxu0 0.0
  %245 = vmatpush1.msra.mxu0 0.0
  %246 = vmatprep.subr.mxu0 0.0
  %247 = vmatpush1.msra.mxu0 0.0
  %248 = vmatprep.subr.mxu0 0.0
  %249 = vmatpush1.msra.mxu0 0.0
  %250 = vmatprep.subr.mxu0 0.0
  %251 = vmatpush1.msra.mxu0 0.0
  %252 = vmatprep.subr.mxu0 0.0
  %253 = vmatpush1.msra.mxu0 0.0
  %254 = vmatprep.subr.mxu0 0.0
  %255 = vmatpush1.msra.mxu0 0.0
  %256 = vmatprep.subr.mxu0 0.0
  %257 = vmatpush1.msra.mxu0 0.0
  %258 = vmatprep.subr.mxu0 0.0
  %259 = vmatpush1.msra.mxu0 0.0
  %260 = vmatprep.subr.mxu0 0.0
  %261 = vmatpush1.msra.mxu0 0.0
  %262 = vmatprep.subr.mxu0 0.0
  %263 = vmatpush1.msra.mxu0 0.0
  %264 = vmatprep.subr.mxu0 0.0
  %265 = vmatpush1.msra.mxu0 0.0
  %266 = vmatprep.subr.mxu0 0.0
  %267 = vmatpush1.msra.mxu0 0.0
  %268 = vmatprep.subr.mxu0 0.0
  %269 = vmatpush1.msra.mxu0 0.0
  %270 = vmatprep.subr.mxu0 0.0
  %271 = vmatpush1.msra.mxu0 0.0
  %272 = vmatprep.subr.mxu0 0.0
  %273 = vmatpush1.msra.mxu0 0.0
  %274 = vmatprep.subr.mxu0 0.0
  %275 = vmatpush1.msra.mxu0 0.0
  %276 = vmatprep.subr.mxu0 0.0
  %277 = vmatpush1.msra.mxu0 0.0
  %278 = vmatprep.subr.mxu0 0.0
  %279 = vmatpush1.msra.mxu0 0.0
  %280 = vmatprep.subr.mxu0 0.0
  %281 = vmatpush1.msra.mxu0 0.0
  %282 = vmatprep.subr.mxu0 0.0
  %283 = vmatpush1.msra.mxu0 0.0
  %284 = vmatprep.subr.mxu0 0.0
  %285 = vmatpush1.msra.mxu0 0.0
  %286 = vmatprep.subr.mxu0 0.0
  %287 = vmatpush1.msra.mxu0 0.0
  %288 = vmatprep.mubr.f32.mxu0 0.0
  %289 = vmatmul.mubr.f32.gmra.mrb[0].mxu0 %v222
  %v290 = vpop.f32.mrb[0].mxu0
  %v291 = vadd.f32 %v219, %v290
  %v292 = vpop.f32.mrb[0].mxu0
  %293 = vdwg.mxu0
  %v294 = vmax.f32 %v291, 0.0
  %v295 = vld [vmem:[%s7] sm:$0xff]
  %v296 = vld [vmem:[%s7 + $0x8] sm:$0xff]
  %v297 = vld [vmem:[%s7 + $0x10] sm:$0xf]
  %v298 = vld [vmem:[%s8] sm:$0x1]
  %v300 = vlaneseq
  %v301 = vshrl.u32 %v300, 7
  %v302 = vsub.s32 0, %v301
  %v303 = vrot.slane %v298, %v302
  %v306 = vsel %vm43, %v294, 0
  %v309 = vsel %vm47, %v297, 0
  %311 = vmatprep.subr.mxu0 0.0
  %312 = vmatpush1.msra.mxu0 %v295
  %313 = vmatprep.subr.mxu0 0.0
  %314 = vmatpush1.msra.mxu0 %v296
  %315 = vmatprep.subr.mxu0 0.0
  %316 = vmatpush1.msra.mxu0 %v309
  %317 = vmatprep.subr.mxu0 0.0
  %318 = vmatpush1.msra.mxu0 0.0
  %319 = vmatprep.subr.mxu0 0.0
  %320 = vmatpush1.msra.mxu0 0.0
  %321 = vmatprep.subr.mxu0 0.0
  %322 = vmatpush1.msra.mxu0 0.0
  %323 = vmatprep.subr.mxu0 0.0
  %324 = vmatpush1.msra.mxu0 0.0
  %325 = vmatprep.subr.mxu0 0.0
  %326 = vmatpush1.msra.mxu0 0.0
  %327 = vmatprep.subr.mxu0 0.0
  %328 = vmatpush1.msra.mxu0 0.0
  %329 = vmatprep.subr.mxu0 0.0
  %330 = vmatpush1.msra.mxu0 0.0
  %331 = vmatprep.subr.mxu0 0.0
  %332 = vmatpush1.msra.mxu0 0.0
  %333 = vmatprep.subr.mxu0 0.0
  %334 = vmatpush1.msra.mxu0 0.0
  %335 = vmatprep.subr.mxu0 0.0
  %336 = vmatpush1.msra.mxu0 0.0
  %337 = vmatprep.subr.mxu0 0.0
  %338 = vmatpush1.msra.mxu0 0.0
  %339 = vmatprep.subr.mxu0 0.0
  %340 = vmatpush1.msra.mxu0 0.0
  %341 = vmatprep.subr.mxu0 0.0
  %342 = vmatpush1.msra.mxu0 0.0
  %343 = vmatprep.subr.mxu0 0.0
  %344 = vmatpush1.msra.mxu0 0.0
  %345 = vmatprep.subr.mxu0 0.0
  %346 = vmatpush1.msra.mxu0 0.0
  %347 = vmatprep.subr.mxu0 0.0
  %348 = vmatpush1.msra.mxu0 0.0
  %349 = vmatprep.subr.mxu0 0.0
  %350 = vmatpush1.msra.mxu0 0.0
  %351 = vmatprep.subr.mxu0 0.0
  %352 = vmatpush1.msra.mxu0 0.0
  %353 = vmatprep.subr.mxu0 0.0
  %354 = vmatpush1.msra.mxu0 0.0
  %355 = vmatprep.subr.mxu0 0.0
  %356 = vmatpush1.msra.mxu0 0.0
  %357 = vmatprep.subr.mxu0 0.0
  %358 = vmatpush1.msra.mxu0 0.0
  %359 = vmatprep.subr.mxu0 0.0
  %360 = vmatpush1.msra.mxu0 0.0
  %361 = vmatprep.subr.mxu0 0.0
  %362 = vmatpush1.msra.mxu0 0.0
  %363 = vmatprep.subr.mxu0 0.0
  %364 = vmatpush1.msra.mxu0 0.0
  %365 = vmatprep.subr.mxu0 0.0
  %366 = vmatpush1.msra.mxu0 0.0
  %367 = vmatprep.subr.mxu0 0.0
  %368 = vmatpush1.msra.mxu0 0.0
  %369 = vmatprep.subr.mxu0 0.0
  %370 = vmatpush1.msra.mxu0 0.0
  %371 = vmatprep.subr.mxu0 0.0
  %372 = vmatpush1.msra.mxu0 0.0
  %373 = vmatprep.subr.mxu0 0.0
  %374 = vmatpush1.msra.mxu0 0.0
  %375 = vmatprep.mubr.f32.mxu0 0.0
  %376 = vmatmul.mubr.f32.gmra.mrb[0].mxu0 %v306
  %v377 = vpop.f32.mrb[0].mxu0
  %v378 = vadd.f32 %v303, %v377
  %v379 = vpop.f32.mrb[0].mxu0
  %380 = vdwg.mxu0
  %vm381 = vcmask 15360
  %v382 = vsel %vm381, %v378, -inf
  %383 = vmax.xlane.f32.xlu0 %v382
  %v384 = vpop.xlane.xlu0 %383
  %v385 = vsub.f32 %v378, %v384
  %v386 = vmul.f32 %v385, 1.442695
  %v387 = vpow.pop %v386
  %v388 = vsel %vm381, %v387, 0.0
  %389 = vadd.xlane.f32.xlu0 %v388
  %v390 = vpop.xlane.xlu0 %389
  %v391 = vrcp.pop %v390
  %v392 = vmul.f32 %v387, %v391
  %393 = vst.msk [vmem:[%s9] sm:$0xff] %vm381, %v392
  // Predicated region
  $region38: #{tpu_custom_call.1} parent=0 // pred_check
    _
  $region39: #{tpu_custom_call.1} parent=0 // pred_check_branch
    %395 = sbr.rel (0) target = $region41
  $region40: #{tpu_custom_call.1} parent=0 // pred_region
    _
  $region41: #{tpu_custom_call.1} parent=0 // pred_fallthru
    _
  // Predicated region
  $region42: #{tpu_custom_call.1} parent=0 // pred_check
    _
  $region43: #{tpu_custom_call.1} parent=0 // pred_check_branch
    %397 = sbr.rel (0) target = $region45
  $region44: #{tpu_custom_call.1} parent=0 // pred_region
    _
  $region45: #{tpu_custom_call.1} parent=0 // pred_fallthru
    _

</llo_original>
